<compile_context>
chip_gen: v6e
topology: v6e:2x2x1
jax: 0.10.0
libtpu: 0.0.40
codegen_flags: <defaults>
</compile_context>

<pallas_src>
import math

import jax
import jax.numpy as jnp
from jax import lax
from jax.experimental import pallas as pl
from jax.experimental.pallas import tpu as pltpu


def _relu_matmul_kernel(x_ref, w_ref, o_ref):
    # ReLU fused on the load path (VPU), one MXU matmul, direct store
    # (no concatenate / extra VMEM temporaries).
    x = jnp.maximum(x_ref[...], 0.0)
    o_ref[...] = jnp.dot(
        x, w_ref[...], preferred_element_type=jnp.float32
    ).astype(o_ref.dtype)


def _pick_tm(m, kdim, cout, itemsize=4, vmem_budget=12 * 1024 * 1024):
    """Largest row-tile keeping double-buffered VMEM under budget.

    Cap at M//2 so even small problems run >=2 pipelined grid steps.
    12 MiB live is safe on all generations (v7x has only 64 MiB VMEM/TC).
    """
    cap = max(m // 2, 8)
    for tm in (2048, 1024, 512, 256, 128, 64, 32, 16, 8):
        if tm > cap:
            continue
        live = (2 * tm * kdim + 2 * tm * cout + 2 * kdim * cout) * itemsize
        if live <= vmem_budget:
            return tm
    return 8


def _relu_conv_pixel_shuffle(x, w, stride, padding, r):
    """One Upsampler unit: ReLU -> Conv2d(stride, pad, no bias) -> PixelShuffle(r).

    x: [N, C_in, H, W] (NCHW), w: [r*r*C_out, C_in, KH, KW]. Returns NCHW.
    """
    N, C_in, H, W = x.shape
    O, C_in_w, KH, KW = w.shape
    assert C_in == C_in_w, "conv in_channels mismatch (same failure as PyTorch)"
    assert O % (r * r) == 0
    C_out = O // (r * r)

    Ho = (H + 2 * padding - KH) // stride + 1
    Wo = (W + 2 * padding - KW) // stride + 1

    # NCHW -> NHWC (channels on the lane axis), spatial zero-pad.
    x_nhwc = jnp.transpose(x, (0, 2, 3, 1))
    x_pad = jnp.pad(
        x_nhwc, ((0, 0), (padding, padding), (padding, padding), (0, 0))
    )

    # im2col with tap order (kh, kw, c) so the conv is a single matmul.
    # TODO(synk): move patch extraction in-kernel (manual halo DMA) to cut this
    # extra HBM pass; the op is bandwidth-bound.
    taps = []
    for kh in range(KH):
        for kw in range(KW):
            taps.append(x_pad[:, kh::stride, kw::stride, :][:, :Ho, :Wo, :])
    kdim = KH * KW * C_in
    M = N * Ho * Wo
    patches = jnp.concatenate(taps, axis=-1).reshape(M, kdim)

    # [O, C_in, KH, KW] -> [KH, KW, C_in, O] -> [kdim, O] to match tap order.
    w_mat = jnp.transpose(w, (2, 3, 1, 0)).reshape(kdim, O).astype(x.dtype)

    itemsize = jnp.dtype(x.dtype).itemsize
    tm = _pick_tm(M, kdim, O, itemsize=itemsize)
    m_pad = pl.cdiv(M, tm) * tm
    if m_pad != M:
        patches = jnp.pad(patches, ((0, m_pad - M), (0, 0)))

    out_flat = pl.pallas_call(
        _relu_matmul_kernel,
        out_shape=jax.ShapeDtypeStruct((m_pad, O), x.dtype),
        grid=(m_pad // tm,),
        in_specs=[
            pl.BlockSpec((tm, kdim), lambda i: (i, 0)),   # row tile of patches
            pl.BlockSpec((kdim, O), lambda i: (0, 0)),    # weight pinned in VMEM
        ],
        out_specs=pl.BlockSpec((tm, O), lambda i: (i, 0)),
        compiler_params=pltpu.CompilerParams(
            dimension_semantics=("parallel",),            # shard rows across TCs (v7x)
            vmem_limit_bytes=32 * 1024 * 1024,
        ),
        cost_estimate=pl.CostEstimate(
            flops=2 * m_pad * kdim * O,
            transcendentals=0,
            bytes_accessed=(m_pad * kdim + kdim * O + m_pad * O) * itemsize,
        ),
    )(patches, w_mat)

    # PixelShuffle(r): channel layout (C_out, r, r) -> spatial interleave, back to NCHW.
    out = out_flat[:M].reshape(N, Ho, Wo, C_out, r, r)
    out = jnp.transpose(out, (0, 3, 1, 4, 2, 5)).reshape(N, C_out, Ho * r, Wo * r)
    return out


def upsampler_forward(x, weights, stride, padding, scale):
    """Forward of the PyTorch Upsampler. `weights`: one conv weight per unit."""
    if scale & (scale - 1) == 0:
        factors = [2] * int(round(math.log2(scale)))
    elif scale == 3:
        factors = [3]
    else:
        raise NotImplementedError
    assert len(weights) == len(factors)
    for w, r in zip(weights, factors):
        x = _relu_conv_pixel_shuffle(x, w, stride, padding, r)
    return x


# ----------------------------------------------------------------------------
# Pure-JAX reference (lax.conv) for correctness checking.
# ----------------------------------------------------------------------------
def _pixel_shuffle_nchw(x, r):
    N, C, H, W = x.shape
    c = C // (r * r)
    x = x.reshape(N, c, r, r, H, W)
    x = jnp.transpose(x, (0, 1, 4, 2, 5, 3))
    return x.reshape(N, c, H * r, W * r)


def _reference(x, weights, stride, padding, scale):
    if scale & (scale - 1) == 0:
        factors = [2] * int(round(math.log2(scale)))
    elif scale == 3:
        factors = [3]
    else:
        raise NotImplementedError
    for w, r in zip(weights, factors):
        h = jnp.maximum(x, 0.0)
        h = lax.conv_general_dilated(
            h, w, window_strides=(stride, stride),
            padding=[(padding, padding), (padding, padding)],
            dimension_numbers=("NCHW", "OIHW", "NCHW"),
            precision=lax.Precision.HIGHEST,
        )
        x = _pixel_shuffle_nchw(h, r)
    return x


if __name__ == "__main__":
    key = jax.random.PRNGKey(0)
    k_x, k_w = jax.random.split(key, 2)

    # Upsampler(C_in=4, C_out=4, kernel_size=3, stride=1, padding=1, scale=2)
    N, C_in, H, W = 2, 4, 16, 16
    C_out, ksize, stride, padding, scale = 4, 3, 1, 1, 2
    r = 2

    x = jax.random.normal(k_x, (N, C_in, H, W), dtype=jnp.float32)
    fan_in = C_in * ksize * ksize
    bound = 1.0 / (fan_in ** 0.5)
    w0 = jax.random.uniform(
        k_w, (r * r * C_out, C_in, ksize, ksize), jnp.float32, -bound, bound
    )

    out = upsampler_forward(x, [w0], stride, padding, scale)
    out = jax.block_until_ready(out)

    ref = _reference(x, [w0], stride, padding, scale)
    assert out.shape == (N, C_out, H * scale, W * scale), out.shape
    assert jnp.allclose(out, ref, atol=2e-4, rtol=2e-4), (
        float(jnp.max(jnp.abs(out - ref)))
    )

    print("KERNEL_OK")
</pallas_src>

<mosaic_0001>
module attributes {stable_mosaic.version = 11 : i64} {
  func.func @_relu_matmul_kernel(%arg0: i32, %arg1: memref<256x36xf32, #tpu.memory_space<vmem>>, %arg2: memref<36x16xf32, #tpu.memory_space<vmem>>, %arg3: memref<256x16xf32, #tpu.memory_space<vmem>>) attributes {dimension_semantics = [#tpu.dimension_semantics<parallel>], iteration_bounds = array<i64: 2>, scalar_prefetch = 0 : i64, scratch_operands = 0 : i64, tpu.core_type = #tpu.core_type<tc>, window_params = [{transform_indices = @transform_0, window_bounds = array<i64: 256, 36>}, {pipeline_mode = #tpu.pipeline_mode<synchronous>, transform_indices = @transform_1, window_bounds = array<i64: 36, 16>}, {transform_indices = @transform_2, window_bounds = array<i64: 256, 16>}]} {
    %c0 = arith.constant 0 : index
    %c0_0 = arith.constant 0 : index
    %0 = vector.load %arg1[%c0, %c0_0] : memref<256x36xf32, #tpu.memory_space<vmem>>, vector<256x36xf32>
    %cst = arith.constant 0.000000e+00 : f32
    %1 = vector.broadcast %cst : f32 to vector<256x36xf32>
    %2 = arith.maximumf %0, %1 : vector<256x36xf32>
    %c0_1 = arith.constant 0 : index
    %c0_2 = arith.constant 0 : index
    %3 = vector.load %arg2[%c0_1, %c0_2] : memref<36x16xf32, #tpu.memory_space<vmem>>, vector<36x16xf32>
    %cst_3 = arith.constant dense<0.000000e+00> : vector<256x16xf32>
    %4 = tpu.matmul %2, %3, %cst_3 {dimension_numbers = #tpu.dot_dimension_numbers<[1], [0], [0], [1], [0, 0, 1, 1], [], []>} : vector<256x36xf32>, vector<36x16xf32>, vector<256x16xf32> -> vector<256x16xf32>
    %c0_4 = arith.constant 0 : index
    %c0_5 = arith.constant 0 : index
    %5 = vector.load %arg3[%c0_4, %c0_5] : memref<256x16xf32, #tpu.memory_space<vmem>>, vector<256x16xf32>
    tpu.vector_store %arg3[%c0_4, %c0_5], %4 {strides = array<i32>} : memref<256x16xf32, #tpu.memory_space<vmem>>, vector<256x16xf32>,
    return
  }
  func.func @transform_0(%arg0: i32) -> (i32, i32) {
    %c0_i32 = arith.constant 0 : i32
    %c0_i32_0 = arith.constant 0 : i32
    return %arg0, %c0_i32 : i32, i32
  }
  func.func @transform_1(%arg0: i32) -> (i32, i32) {
    %c0_i32 = arith.constant 0 : i32
    %c0_i32_0 = arith.constant 0 : i32
    %c0_i32_1 = arith.constant 0 : i32
    return %c0_i32, %c0_i32_0 : i32, i32
  }
  func.func @transform_2(%arg0: i32) -> (i32, i32) {
    %c0_i32 = arith.constant 0 : i32
    %c0_i32_0 = arith.constant 0 : i32
    return %arg0, %c0_i32 : i32, i32
  }
}

</mosaic_0001>

<llo_original>
// kernel: tpu_custom_call.1
$region0: #{tpu_custom_call.1}
  #allocation0 [shape = 'u32[]', space=smem, size = 0x4, offset = 0x4, fixed_abs, tag = 'smem constant byte address 0x4 - core index']
  #allocation1 [shape = 'u32[144,128]{1,0:T(1,128)}', space=vmem, size = 0x12000, scoped, tag = 'internal scratch']
  %s0 = inlined_call_operand.vmem [shape: f32[512,36], index: 0, kind: input, shape index: {}]
  %s1 = inlined_call_operand.vmem [shape: f32[36,16], index: 1, kind: input, shape index: {}]
  %s2 = inlined_call_operand.vmem [shape: f32[512,16], index: 2, kind: output, shape index: {}]
  %s3 = sld [smem:[#allocation0]]
  $region41: #{tpu_custom_call.1} parent=0
    _
  %s5 = ssub.s32 1, %s3
  %s6 = scalar_select 0, %s5, %s3
  loop: start=0, step=1, limit=4
  $region2: #{tpu_custom_call.1} parent=0 // loop_pre_header
    _
  $region3: #{tpu_custom_call.1} parent=0 // loop_header
    %s8 = sphi 0, %s12
    %p9 = scmp.ge.s32.totalorder %s8, 4
    %s18 = sphi 0, %s20
    %s21 = sphi 0, %s18
    %s22 = sphi 0, %s21
    %s38 = sphi 0, %s22
    %s42 = sphi 0, %s42
    %s44 = sphi 0, %s42
    %s45 = sphi 0, %s44
    %s59 = sphi 0, %s45
    %s65 = sphi 0, %s67
    %s68 = sphi 0, %s65
    %s69 = sphi 0, %s68
    %s85 = sphi 0, %s69
  $region4: #{tpu_custom_call.1} parent=0 // loop_header_branch
    %11 = sbr.rel (%p9) target = $region8
  $region5: #{tpu_custom_call.1} parent=0 // loop_body
    %s13 = ssub.s32 %s8, 1
    %s14 = ssub.s32 %s8, 2
    %s15 = sadd.s32 %s8, 1
    %s16 = ssub.s32 %s8, %s15
    %p17 = scmp.eq.s32.totalorder %s16, 0
    %s19 = sadd.s32 %s18, 1
    %s20 = scalar_select %p17, %s18, %s19
    %p23 = pneg %p17
    %p24 = scmp.eq.s32.totalorder %s8, 1
    %p25 = por %p23, %p24
    %p26 = scmp.ne.s32.totalorder %s18, %s21
    %p27 = scmp.eq.s32.totalorder %s8, 0
    %p28 = por %p26, %p27
    %p29 = scmp.ne.s32.totalorder %s18, %s21
    %p30 = scmp.eq.s32.totalorder %s13, 1
    %p31 = por %p29, %p30
    %p32 = scmp.ne.s32.totalorder %s21, %s22
    %p33 = scmp.eq.s32.totalorder %s13, 0
    %p34 = por %p32, %p33
    %p35 = scmp.ne.s32.totalorder %s21, %s22
    %p36 = scmp.eq.s32.totalorder %s14, 1
    %p37 = por %p35, %p36
    %p39 = scmp.ne.s32.totalorder %s22, %s38
    %p40 = scmp.eq.s32.totalorder %s14, 0
    %p41 = por %p39, %p40
    %s43 = sadd.s32 %s42, 1
    %p46 = scmp.eq.s32.totalorder %s8, 1
    %p47 = scmp.ne.s32.totalorder %s42, %s44
    %p48 = scmp.eq.s32.totalorder %s8, 0
    %p49 = por %p47, %p48
    %p50 = scmp.ne.s32.totalorder %s42, %s44
    %p51 = scmp.eq.s32.totalorder %s13, 1
    %p52 = por %p50, %p51
    %p53 = scmp.ne.s32.totalorder %s44, %s45
    %p54 = scmp.eq.s32.totalorder %s13, 0
    %p55 = por %p53, %p54
    %p56 = scmp.ne.s32.totalorder %s44, %s45
    %p57 = scmp.eq.s32.totalorder %s14, 1
    %p58 = por %p56, %p57
    %p60 = scmp.ne.s32.totalorder %s45, %s59
    %p61 = scmp.eq.s32.totalorder %s14, 0
    %p62 = por %p60, %p61
    %s63 = ssub.s32 %s8, %s15
    %p64 = scmp.eq.s32.totalorder %s63, 0
    %s66 = sadd.s32 %s65, 1
    %s67 = scalar_select %p64, %s65, %s66
    %p70 = pneg %p64
    %p71 = scmp.eq.s32.totalorder %s8, 1
    %p72 = por %p70, %p71
    %p73 = scmp.ne.s32.totalorder %s65, %s68
    %p74 = scmp.eq.s32.totalorder %s8, 0
    %p75 = por %p73, %p74
    %p76 = scmp.ne.s32.totalorder %s65, %s68
    %p77 = scmp.eq.s32.totalorder %s13, 1
    %p78 = por %p76, %p77
    %p79 = scmp.ne.s32.totalorder %s68, %s69
    %p80 = scmp.eq.s32.totalorder %s13, 0
    %p81 = por %p79, %p80
    %p82 = scmp.ne.s32.totalorder %s68, %s69
    %p83 = scmp.eq.s32.totalorder %s14, 1
    %p84 = por %p82, %p83
    %p86 = scmp.ne.s32.totalorder %s69, %s85
    %p87 = scmp.eq.s32.totalorder %s14, 0
    %p88 = por %p86, %p87
    %p89 = scmp.le.s32.totalorder 1, %s8
    %p90 = scmp.lt.s32.totalorder %s8, 3
    %p91 = pnand %p89, %p90
    %p92 = pneg %p91
    // Predicated region
    $region9: #{tpu_custom_call.1} parent=5 // pred_check
      _
    $region10: #{tpu_custom_call.1} parent=5 // pred_check_branch
      %94 = sbr.rel (%p91) target = $region12
    $region11: #{tpu_custom_call.1} parent=5 // pred_region
      %s95 = ssub.s32 %s8, 1
      // Predicated region
      $region13: #{tpu_custom_call.1} parent=11 // pred_check
        %p96 = pneg %p55
      $region14: #{tpu_custom_call.1} parent=11 // pred_check_branch
        %98 = sbr.rel (%p96) target = $region16
      $region15: #{tpu_custom_call.1} parent=11 // pred_region
        _
      $region16: #{tpu_custom_call.1} parent=11 // pred_fallthru
        _
    $region12: #{tpu_custom_call.1} parent=5 // pred_fallthru
      _
    %p99 = scmp.lt.s32.totalorder %s8, 2
    // Predicated region
    $region17: #{tpu_custom_call.1} parent=5 // pred_check
      %p100 = pneg %p99
    $region18: #{tpu_custom_call.1} parent=5 // pred_check_branch
      %102 = sbr.rel (%p100) target = $region20
    $region19: #{tpu_custom_call.1} parent=5 // pred_region
      // Predicated region
      $region21: #{tpu_custom_call.1} parent=19 // pred_check
        %p103 = pneg %p28
      $region22: #{tpu_custom_call.1} parent=19 // pred_check_branch
        %105 = sbr.rel (%p103) target = $region24
      $region23: #{tpu_custom_call.1} parent=19 // pred_region
        %s106 = smul.u32 32, %s8
        %p107 = scmp.lt.s32.totalorder %s106, 63
        %s108 = scalar_select %p107, %s106, 63
        %s109 = smul.addr %s108, 8
        %s110 = scalar_lea.vmem %s0, %s109
        %s111 = smul.u32 32, %s8
      $region24: #{tpu_custom_call.1} parent=19 // pred_fallthru
        _
    $region20: #{tpu_custom_call.1} parent=5 // pred_fallthru
      _
    %p112 = scmp.le.s32.totalorder 1, %s8
    %p113 = scmp.lt.s32.totalorder %s8, 3
    %p114 = pnand %p112, %p113
    %p115 = pneg %p114
    // Predicated region
    $region25: #{tpu_custom_call.1} parent=5 // pred_check
      _
    $region26: #{tpu_custom_call.1} parent=5 // pred_check_branch
      %117 = sbr.rel (%p114) target = $region28
    $region27: #{tpu_custom_call.1} parent=5 // pred_region
      %s118 = ssub.s32 %s8, 1
      %s119 = smul.u32 32, %s13
      %p120 = scmp.lt.s32.totalorder %s119, 63
      %s121 = scalar_select %p120, %s119, 63
      %s122 = smul.addr %s121, 8
      %s123 = scalar_lea.vmem %s0, %s122
      %p124 = pneg %p34
      %p125 = pneg %p31
      %p126 = pneg %p55
      %p127 = pneg %p52
      %p128 = pneg %p81
      %p129 = pneg %p78
      %s130 = smul.u32 32, %s13
      %p131 = scmp.lt.s32.totalorder %s130, 63
      %s132 = scalar_select %p131, %s130, 63
      %s133 = smul.addr %s132, 8
      %s134 = scalar_lea.vmem %s2, %s133
      %s135 = smul.u32 32, %s13
      %p136 = scmp.lt.s32.totalorder %s135, 63
      %s137 = scalar_select %p136, %s135, 63
      %s138 = smul.addr %s137, 8
      %s139 = scalar_lea.vmem %s0, %s138
      %s140 = smul.u32 32, %s13
      %s141 = smul.u32 32, %s13
      %p142 = scmp.lt.s32.totalorder %s141, 63
      %s143 = scalar_select %p142, %s141, 63
      %s144 = smul.addr %s143, 8
      %s145 = scalar_lea.vmem %s2, %s144
      %s146 = smul.u32 32, %s13
      %v147 = vld [vmem:[%s139] sm:$0xff]
      %v148 = vld [vmem:[%s139 + $0x8] sm:$0xff]
      %v149 = vld [vmem:[%s139 + $0x10] sm:$0xff]
      %v150 = vld [vmem:[%s139 + $0x18] sm:$0xff]
      %v151 = vld [vmem:[%s139 + $0x20] sm:$0xff]
      %v152 = vld [vmem:[%s139 + $0x28] sm:$0xff]
      %v153 = vld [vmem:[%s139 + $0x30] sm:$0xff]
      %v154 = vld [vmem:[%s139 + $0x38] sm:$0xff]
      %v155 = vld [vmem:[%s139 + $0x40] sm:$0xff]
      %v156 = vld [vmem:[%s139 + $0x48] sm:$0xff]
      %v157 = vld [vmem:[%s139 + $0x50] sm:$0xff]
      %v158 = vld [vmem:[%s139 + $0x58] sm:$0xff]
      %v159 = vld [vmem:[%s139 + $0x60] sm:$0xff]
      %v160 = vld [vmem:[%s139 + $0x68] sm:$0xff]
      %v161 = vld [vmem:[%s139 + $0x70] sm:$0xff]
      %v162 = vld [vmem:[%s139 + $0x78] sm:$0xff]
      %v163 = vld [vmem:[%s139 + $0x80] sm:$0xff]
      %v164 = vld [vmem:[%s139 + $0x88] sm:$0xff]
      %v165 = vld [vmem:[%s139 + $0x90] sm:$0xff]
      %v166 = vld [vmem:[%s139 + $0x98] sm:$0xff]
      %v167 = vld [vmem:[%s139 + $0xa0] sm:$0xff]
      %v168 = vld [vmem:[%s139 + $0xa8] sm:$0xff]
      %v169 = vld [vmem:[%s139 + $0xb0] sm:$0xff]
      %v170 = vld [vmem:[%s139 + $0xb8] sm:$0xff]
      %v171 = vld [vmem:[%s139 + $0xc0] sm:$0xff]
      %v172 = vld [vmem:[%s139 + $0xc8] sm:$0xff]
      %v173 = vld [vmem:[%s139 + $0xd0] sm:$0xff]
      %v174 = vld [vmem:[%s139 + $0xd8] sm:$0xff]
      %v175 = vld [vmem:[%s139 + $0xe0] sm:$0xff]
      %v176 = vld [vmem:[%s139 + $0xe8] sm:$0xff]
      %v177 = vld [vmem:[%s139 + $0xf0] sm:$0xff]
      %v178 = vld [vmem:[%s139 + $0xf8] sm:$0xff]
      %v179 = vmax.f32 %v147, 0.0
      %v180 = vmax.f32 %v148, 0.0
      %v181 = vmax.f32 %v149, 0.0
      %v182 = vmax.f32 %v150, 0.0
      %v183 = vmax.f32 %v151, 0.0
      %v184 = vmax.f32 %v152, 0.0
      %v185 = vmax.f32 %v153, 0.0
      %v186 = vmax.f32 %v154, 0.0
      %v187 = vmax.f32 %v155, 0.0
      %v188 = vmax.f32 %v156, 0.0
      %v189 = vmax.f32 %v157, 0.0
      %v190 = vmax.f32 %v158, 0.0
      %v191 = vmax.f32 %v159, 0.0
      %v192 = vmax.f32 %v160, 0.0
      %v193 = vmax.f32 %v161, 0.0
      %v194 = vmax.f32 %v162, 0.0
      %v195 = vmax.f32 %v163, 0.0
      %v196 = vmax.f32 %v164, 0.0
      %v197 = vmax.f32 %v165, 0.0
      %v198 = vmax.f32 %v166, 0.0
      %v199 = vmax.f32 %v167, 0.0
      %v200 = vmax.f32 %v168, 0.0
      %v201 = vmax.f32 %v169, 0.0
      %v202 = vmax.f32 %v170, 0.0
      %v203 = vmax.f32 %v171, 0.0
      %v204 = vmax.f32 %v172, 0.0
      %v205 = vmax.f32 %v173, 0.0
      %v206 = vmax.f32 %v174, 0.0
      %v207 = vmax.f32 %v175, 0.0
      %v208 = vmax.f32 %v176, 0.0
      %v209 = vmax.f32 %v177, 0.0
      %v210 = vmax.f32 %v178, 0.0
      %v211 = vld [vmem:[%s1] sm:$0xff]
      %v212 = vld [vmem:[%s1 + $0x8] sm:$0xff]
      %v213 = vld [vmem:[%s1 + $0x10] sm:$0xff]
      %v214 = vld [vmem:[%s1 + $0x18] sm:$0xff]
      %v215 = vld [vmem:[%s1 + $0x20] sm:$0xf]
      %vm216 = vcmask 293888
      %v218 = vsel %vm216, %v179, 0
      %v221 = vsel %vm216, %v180, 0
      %v224 = vsel %vm216, %v181, 0
      %v227 = vsel %vm216, %v182, 0
      %v230 = vsel %vm216, %v183, 0
      %v233 = vsel %vm216, %v184, 0
      %v236 = vsel %vm216, %v185, 0
      %v239 = vsel %vm216, %v186, 0
      %v242 = vsel %vm216, %v187, 0
      %v245 = vsel %vm216, %v188, 0
      %v248 = vsel %vm216, %v189, 0
      %v251 = vsel %vm216, %v190, 0
      %v254 = vsel %vm216, %v191, 0
      %v257 = vsel %vm216, %v192, 0
      %v260 = vsel %vm216, %v193, 0
      %v263 = vsel %vm216, %v194, 0
      %v266 = vsel %vm216, %v195, 0
      %v269 = vsel %vm216, %v196, 0
      %v272 = vsel %vm216, %v197, 0
      %v275 = vsel %vm216, %v198, 0
      %v278 = vsel %vm216, %v199, 0
      %v281 = vsel %vm216, %v200, 0
      %v284 = vsel %vm216, %v201, 0
      %v287 = vsel %vm216, %v202, 0
      %v290 = vsel %vm216, %v203, 0
      %v293 = vsel %vm216, %v204, 0
      %v296 = vsel %vm216, %v205, 0
      %v299 = vsel %vm216, %v206, 0
      %v302 = vsel %vm216, %v207, 0
      %v305 = vsel %vm216, %v208, 0
      %v308 = vsel %vm216, %v209, 0
      %v311 = vsel %vm216, %v210, 0
      %vm313 = vcmask 1043456
      %v315 = vsel %vm313, %v215, 0
      %317 = vmatprep.subr.mxu0 0.0
      %318 = vmatpush1.msra.mxu0 0.0
      %319 = vmatprep.subr.mxu0 0.0
      %320 = vmatpush1.msra.mxu0 0.0
      %321 = vmatprep.subr.mxu0 0.0
      %322 = vmatpush1.msra.mxu0 0.0
      %323 = vmatprep.subr.mxu0 0.0
      %324 = vmatpush1.msra.mxu0 0.0
      %325 = vmatprep.subr.mxu0 0.0
      %326 = vmatpush1.msra.mxu0 0.0
      %327 = vmatprep.subr.mxu0 0.0
      %328 = vmatpush1.msra.mxu0 0.0
      %329 = vmatprep.subr.mxu0 0.0
      %330 = vmatpush1.msra.mxu0 0.0
      %331 = vmatprep.subr.mxu0 0.0
      %332 = vmatpush1.msra.mxu0 0.0
      %333 = vmatprep.subr.mxu0 0.0
      %334 = vmatpush1.msra.mxu0 0.0
      %335 = vmatprep.subr.mxu0 0.0
      %336 = vmatpush1.msra.mxu0 0.0
      %337 = vmatprep.subr.mxu0 0.0
      %338 = vmatpush1.msra.mxu0 0.0
      %339 = vmatprep.subr.mxu0 0.0
      %340 = vmatpush1.msra.mxu0 %v315
      %341 = vmatprep.subr.mxu0 0.0
      %342 = vmatpush1.msra.mxu0 %v214
      %343 = vmatprep.subr.mxu0 0.0
      %344 = vmatpush1.msra.mxu0 %v213
      %345 = vmatprep.subr.mxu0 0.0
      %346 = vmatpush1.msra.mxu0 %v212
      %347 = vmatprep.subr.mxu0 0.0
      %348 = vmatpush1.msra.mxu0 %v211
      %349 = vmatprep.subr.mxu0 0.0
      %350 = vmatpush2.msra.mxu0 0.0
      %351 = vmatprep.subr.mxu0 0.0
      %352 = vmatpush2.msra.mxu0 0.0
      %353 = vmatprep.subr.mxu0 0.0
      %354 = vmatpush2.msra.mxu0 0.0
      %355 = vmatprep.subr.mxu0 0.0
      %356 = vmatpush2.msra.mxu0 0.0
      %357 = vmatprep.subr.mxu0 0.0
      %358 = vmatpush2.msra.mxu0 0.0
      %359 = vmatprep.subr.mxu0 0.0
      %360 = vmatpush2.msra.mxu0 0.0
      %361 = vmatprep.subr.mxu0 0.0
      %362 = vmatpush2.msra.mxu0 0.0
      %363 = vmatprep.subr.mxu0 0.0
      %364 = vmatpush2.msra.mxu0 0.0
      %365 = vmatprep.subr.mxu0 0.0
      %366 = vmatpush2.msra.mxu0 0.0
      %367 = vmatprep.subr.mxu0 0.0
      %368 = vmatpush2.msra.mxu0 0.0
      %369 = vmatprep.subr.mxu0 0.0
      %370 = vmatpush2.msra.mxu0 0.0
      %371 = vmatprep.subr.mxu0 0.0
      %372 = vmatpush2.msra.mxu0 0.0
      %373 = vmatprep.subr.mxu0 0.0
      %374 = vmatpush2.msra.mxu0 0.0
      %375 = vmatprep.subr.mxu0 0.0
      %376 = vmatpush2.msra.mxu0 0.0
      %377 = vmatprep.subr.mxu0 0.0
      %378 = vmatpush2.msra.mxu0 0.0
      %379 = vmatprep.subr.mxu0 0.0
      %380 = vmatpush2.msra.mxu0 0.0
      %381 = vmatprep.mubr.f32.mxu0 0.0
      %382 = vmatmul.mubr.f32.gmra.mxu0 %v218
      %v383 = vpop.f32.mrf.mxu0
      %v384 = vadd.f32 0.0, %v383
      %v385 = vpop.f32.mrf.mxu0
      %386 = vmatprep.mubr.f32.mxu0 0.0
      %387 = vmatmul.mubr.f32.gmra.mxu0 %v221
      %v388 = vpop.f32.mrf.mxu0
      %v389 = vadd.f32 0.0, %v388
      %v390 = vpop.f32.mrf.mxu0
      %391 = vmatprep.mubr.f32.mxu0 0.0
      %392 = vmatmul.mubr.f32.gmra.mxu0 %v224
      %v393 = vpop.f32.mrf.mxu0
      %v394 = vadd.f32 0.0, %v393
      %v395 = vpop.f32.mrf.mxu0
      %396 = vmatprep.mubr.f32.mxu0 0.0
      %397 = vmatmul.mubr.f32.gmra.mxu0 %v227
      %v398 = vpop.f32.mrf.mxu0
      %v399 = vadd.f32 0.0, %v398
      %v400 = vpop.f32.mrf.mxu0
      %401 = vmatprep.mubr.f32.mxu0 0.0
      %402 = vmatmul.mubr.f32.gmra.mxu0 %v230
      %v403 = vpop.f32.mrf.mxu0
      %v404 = vadd.f32 0.0, %v403
      %v405 = vpop.f32.mrf.mxu0
      %406 = vmatprep.mubr.f32.mxu0 0.0
      %407 = vmatmul.mubr.f32.gmra.mxu0 %v233
      %v408 = vpop.f32.mrf.mxu0
      %v409 = vadd.f32 0.0, %v408
      %v410 = vpop.f32.mrf.mxu0
      %411 = vmatprep.mubr.f32.mxu0 0.0
      %412 = vmatmul.mubr.f32.gmra.mxu0 %v236
      %v413 = vpop.f32.mrf.mxu0
      %v414 = vadd.f32 0.0, %v413
      %v415 = vpop.f32.mrf.mxu0
      %416 = vmatprep.mubr.f32.mxu0 0.0
      %417 = vmatmul.mubr.f32.gmra.mxu0 %v239
      %v418 = vpop.f32.mrf.mxu0
      %v419 = vadd.f32 0.0, %v418
      %v420 = vpop.f32.mrf.mxu0
      %421 = vmatprep.mubr.f32.mxu0 0.0
      %422 = vmatmul.mubr.f32.gmra.mxu0 %v242
      %v423 = vpop.f32.mrf.mxu0
      %v424 = vadd.f32 0.0, %v423
      %v425 = vpop.f32.mrf.mxu0
      %426 = vmatprep.mubr.f32.mxu0 0.0
      %427 = vmatmul.mubr.f32.gmra.mxu0 %v245
      %v428 = vpop.f32.mrf.mxu0
      %v429 = vadd.f32 0.0, %v428
      %v430 = vpop.f32.mrf.mxu0
      %431 = vmatprep.mubr.f32.mxu0 0.0
      %432 = vmatmul.mubr.f32.gmra.mxu0 %v248
      %v433 = vpop.f32.mrf.mxu0
      %v434 = vadd.f32 0.0, %v433
      %v435 = vpop.f32.mrf.mxu0
      %436 = vmatprep.mubr.f32.mxu0 0.0
      %437 = vmatmul.mubr.f32.gmra.mxu0 %v251
      %v438 = vpop.f32.mrf.mxu0
      %v439 = vadd.f32 0.0, %v438
      %v440 = vpop.f32.mrf.mxu0
      %441 = vmatprep.mubr.f32.mxu0 0.0
      %442 = vmatmul.mubr.f32.gmra.mxu0 %v254
      %v443 = vpop.f32.mrf.mxu0
      %v444 = vadd.f32 0.0, %v443
      %v445 = vpop.f32.mrf.mxu0
      %446 = vmatprep.mubr.f32.mxu0 0.0
      %447 = vmatmul.mubr.f32.gmra.mxu0 %v257
      %v448 = vpop.f32.mrf.mxu0
      %v449 = vadd.f32 0.0, %v448
      %v450 = vpop.f32.mrf.mxu0
      %451 = vmatprep.mubr.f32.mxu0 0.0
      %452 = vmatmul.mubr.f32.gmra.mxu0 %v260
      %v453 = vpop.f32.mrf.mxu0
      %v454 = vadd.f32 0.0, %v453
      %v455 = vpop.f32.mrf.mxu0
      %456 = vmatprep.mubr.f32.mxu0 0.0
      %457 = vmatmul.mubr.f32.gmra.mxu0 %v263
      %v458 = vpop.f32.mrf.mxu0
      %v459 = vadd.f32 0.0, %v458
      %v460 = vpop.f32.mrf.mxu0
      %461 = vmatprep.mubr.f32.mxu0 0.0
      %462 = vmatmul.mubr.f32.gmra.mxu0 %v266
      %v463 = vpop.f32.mrf.mxu0
      %v464 = vadd.f32 0.0, %v463
      %v465 = vpop.f32.mrf.mxu0
      %466 = vmatprep.mubr.f32.mxu0 0.0
      %467 = vmatmul.mubr.f32.gmra.mxu0 %v269
      %v468 = vpop.f32.mrf.mxu0
      %v469 = vadd.f32 0.0, %v468
      %v470 = vpop.f32.mrf.mxu0
      %471 = vmatprep.mubr.f32.mxu0 0.0
      %472 = vmatmul.mubr.f32.gmra.mxu0 %v272
      %v473 = vpop.f32.mrf.mxu0
      %v474 = vadd.f32 0.0, %v473
      %v475 = vpop.f32.mrf.mxu0
      %476 = vmatprep.mubr.f32.mxu0 0.0
      %477 = vmatmul.mubr.f32.gmra.mxu0 %v275
      %v478 = vpop.f32.mrf.mxu0
      %v479 = vadd.f32 0.0, %v478
      %v480 = vpop.f32.mrf.mxu0
      %481 = vmatprep.mubr.f32.mxu0 0.0
      %482 = vmatmul.mubr.f32.gmra.mxu0 %v278
      %v483 = vpop.f32.mrf.mxu0
      %v484 = vadd.f32 0.0, %v483
      %v485 = vpop.f32.mrf.mxu0
      %486 = vmatprep.mubr.f32.mxu0 0.0
      %487 = vmatmul.mubr.f32.gmra.mxu0 %v281
      %v488 = vpop.f32.mrf.mxu0
      %v489 = vadd.f32 0.0, %v488
      %v490 = vpop.f32.mrf.mxu0
      %491 = vmatprep.mubr.f32.mxu0 0.0
      %492 = vmatmul.mubr.f32.gmra.mxu0 %v284
      %v493 = vpop.f32.mrf.mxu0
      %v494 = vadd.f32 0.0, %v493
      %v495 = vpop.f32.mrf.mxu0
      %496 = vmatprep.mubr.f32.mxu0 0.0
      %497 = vmatmul.mubr.f32.gmra.mxu0 %v287
      %v498 = vpop.f32.mrf.mxu0
      %v499 = vadd.f32 0.0, %v498
      %v500 = vpop.f32.mrf.mxu0
      %501 = vmatprep.mubr.f32.mxu0 0.0
      %502 = vmatmul.mubr.f32.gmra.mxu0 %v290
      %v503 = vpop.f32.mrf.mxu0
      %v504 = vadd.f32 0.0, %v503
      %v505 = vpop.f32.mrf.mxu0
      %506 = vmatprep.mubr.f32.mxu0 0.0
      %507 = vmatmul.mubr.f32.gmra.mxu0 %v293
      %v508 = vpop.f32.mrf.mxu0
      %v509 = vadd.f32 0.0, %v508
      %v510 = vpop.f32.mrf.mxu0
      %511 = vmatprep.mubr.f32.mxu0 0.0
      %512 = vmatmul.mubr.f32.gmra.mxu0 %v296
      %v513 = vpop.f32.mrf.mxu0
      %v514 = vadd.f32 0.0, %v513
      %v515 = vpop.f32.mrf.mxu0
      %516 = vmatprep.mubr.f32.mxu0 0.0
      %517 = vmatmul.mubr.f32.gmra.mxu0 %v299
      %v518 = vpop.f32.mrf.mxu0
      %v519 = vadd.f32 0.0, %v518
      %v520 = vpop.f32.mrf.mxu0
      %521 = vmatprep.mubr.f32.mxu0 0.0
      %522 = vmatmul.mubr.f32.gmra.mxu0 %v302
      %v523 = vpop.f32.mrf.mxu0
      %v524 = vadd.f32 0.0, %v523
      %v525 = vpop.f32.mrf.mxu0
      %526 = vmatprep.mubr.f32.mxu0 0.0
      %527 = vmatmul.mubr.f32.gmra.mxu0 %v305
      %v528 = vpop.f32.mrf.mxu0
      %v529 = vadd.f32 0.0, %v528
      %v530 = vpop.f32.mrf.mxu0
      %531 = vmatprep.mubr.f32.mxu0 0.0
      %532 = vmatmul.mubr.f32.gmra.mxu0 %v308
      %v533 = vpop.f32.mrf.mxu0
      %v534 = vadd.f32 0.0, %v533
      %v535 = vpop.f32.mrf.mxu0
      %536 = vmatprep.mubr.f32.mxu0 0.0
      %537 = vmatmul.mubr.f32.gmra.mxu0 %v311
      %v538 = vpop.f32.mrf.mxu0
      %v539 = vadd.f32 0.0, %v538
      %v540 = vpop.f32.mrf.mxu0
      %541 = vdwg.mxu0
      %vm542 = vcmask 130048
      %543 = vst.msk [vmem:[%s145] sm:$0xff] %vm542, %v384
      %544 = vst.msk [vmem:[%s145 + $0x8] sm:$0xff] %vm542, %v389
      %545 = vst.msk [vmem:[%s145 + $0x10] sm:$0xff] %vm542, %v394
      %546 = vst.msk [vmem:[%s145 + $0x18] sm:$0xff] %vm542, %v399
      %547 = vst.msk [vmem:[%s145 + $0x20] sm:$0xff] %vm542, %v404
      %548 = vst.msk [vmem:[%s145 + $0x28] sm:$0xff] %vm542, %v409
      %549 = vst.msk [vmem:[%s145 + $0x30] sm:$0xff] %vm542, %v414
      %550 = vst.msk [vmem:[%s145 + $0x38] sm:$0xff] %vm542, %v419
      %551 = vst.msk [vmem:[%s145 + $0x40] sm:$0xff] %vm542, %v424
      %552 = vst.msk [vmem:[%s145 + $0x48] sm:$0xff] %vm542, %v429
      %553 = vst.msk [vmem:[%s145 + $0x50] sm:$0xff] %vm542, %v434
      %554 = vst.msk [vmem:[%s145 + $0x58] sm:$0xff] %vm542, %v439
      %555 = vst.msk [vmem:[%s145 + $0x60] sm:$0xff] %vm542, %v444
      %556 = vst.msk [vmem:[%s145 + $0x68] sm:$0xff] %vm542, %v449
      %557 = vst.msk [vmem:[%s145 + $0x70] sm:$0xff] %vm542, %v454
      %558 = vst.msk [vmem:[%s145 + $0x78] sm:$0xff] %vm542, %v459
      %559 = vst.msk [vmem:[%s145 + $0x80] sm:$0xff] %vm542, %v464
      %560 = vst.msk [vmem:[%s145 + $0x88] sm:$0xff] %vm542, %v469
      %561 = vst.msk [vmem:[%s145 + $0x90] sm:$0xff] %vm542, %v474
      %562 = vst.msk [vmem:[%s145 + $0x98] sm:$0xff] %vm542, %v479
      %563 = vst.msk [vmem:[%s145 + $0xa0] sm:$0xff] %vm542, %v484
      %564 = vst.msk [vmem:[%s145 + $0xa8] sm:$0xff] %vm542, %v489
      %565 = vst.msk [vmem:[%s145 + $0xb0] sm:$0xff] %vm542, %v494
      %566 = vst.msk [vmem:[%s145 + $0xb8] sm:$0xff] %vm542, %v499
      %567 = vst.msk [vmem:[%s145 + $0xc0] sm:$0xff] %vm542, %v504
      %568 = vst.msk [vmem:[%s145 + $0xc8] sm:$0xff] %vm542, %v509
      %569 = vst.msk [vmem:[%s145 + $0xd0] sm:$0xff] %vm542, %v514
      %570 = vst.msk [vmem:[%s145 + $0xd8] sm:$0xff] %vm542, %v519
      %571 = vst.msk [vmem:[%s145 + $0xe0] sm:$0xff] %vm542, %v524
      %572 = vst.msk [vmem:[%s145 + $0xe8] sm:$0xff] %vm542, %v529
      %573 = vst.msk [vmem:[%s145 + $0xf0] sm:$0xff] %vm542, %v534
      %574 = vst.msk [vmem:[%s145 + $0xf8] sm:$0xff] %vm542, %v539
      %s575 = smul.u32 32, %s13
      %p576 = scmp.lt.s32.totalorder %s575, 63
      %s577 = scalar_select %p576, %s575, 63
      %s578 = smul.addr %s577, 8
      %s579 = scalar_lea.vmem %s2, %s578
      // Predicated region
      $region29: #{tpu_custom_call.1} parent=27 // pred_check
        %p580 = pneg %p78
      $region30: #{tpu_custom_call.1} parent=27 // pred_check_branch
        %582 = sbr.rel (%p580) target = $region32
      $region31: #{tpu_custom_call.1} parent=27 // pred_region
        %s583 = smul.u32 32, %s13
      $region32: #{tpu_custom_call.1} parent=27 // pred_fallthru
        _
    $region28: #{tpu_custom_call.1} parent=5 // pred_fallthru
      _
    %p584 = scmp.le.s32.totalorder 2, %s8
    // Predicated region
    $region33: #{tpu_custom_call.1} parent=5 // pred_check
      %p585 = pneg %p584
    $region34: #{tpu_custom_call.1} parent=5 // pred_check_branch
      %587 = sbr.rel (%p585) target = $region36
    $region35: #{tpu_custom_call.1} parent=5 // pred_region
      %s588 = ssub.s32 %s8, 2
      // Predicated region
      $region37: #{tpu_custom_call.1} parent=35 // pred_check
        %p589 = pneg %p84
      $region38: #{tpu_custom_call.1} parent=35 // pred_check_branch
        %591 = sbr.rel (%p589) target = $region40
      $region39: #{tpu_custom_call.1} parent=35 // pred_region
        %s592 = smul.u32 32, %s14
        %p593 = scmp.lt.s32.totalorder %s592, 63
        %s594 = scalar_select %p593, %s592, 63
        %s595 = smul.addr %s594, 8
        %s596 = scalar_lea.vmem %s2, %s595
      $region40: #{tpu_custom_call.1} parent=35 // pred_fallthru
        _
    $region36: #{tpu_custom_call.1} parent=5 // pred_fallthru
      _
  $region6: #{tpu_custom_call.1} parent=0 // loop_footer
    %s12 = sadd.s32 1, %s8
  $region7: #{tpu_custom_call.1} parent=0 // loop_footer_branch
    %7 = sbr.rel target = $region3
  $region8: #{tpu_custom_call.1} parent=0 // loop_exit
    _

</llo_original>
